<compile_context>
chip_gen: v7x
topology: tpu7x:2x2x1
jax: 0.10.0
libtpu: 0.0.40
codegen_flags: <defaults>
</compile_context>

<pallas_src>
import functools
import math

import jax
import jax.numpy as jnp
from jax.experimental import pallas as pl
from jax.experimental.pallas import tpu as pltpu


def pos_adapter_kernel(llm_idx_ref,          # SMEM (N_pad,) int32   (scalar prefetch)
                       ids_ref,              # VMEM (TN, 1) int32    (pipelined tile)
                       freqs_ref,            # VMEM (1, half) f32    (resident)
                       wsin_ref,             # VMEM (half, 4*Dp) bf16 (resident, fused)
                       wcos_ref,             # VMEM (half, 4*Dp) bf16 (resident, fused)
                       bcat_ref,             # VMEM (1, 4*Dp) f32    (resident, fused)
                       embed_hbm,            # HBM  (V, Dp) f32      (pl.ANY, gathered)
                       out_ref,              # VMEM (TN, Dp) f32
                       gbuf, sem,            # scratch: VMEM (2*TN, Dp) f32, DMA sem (2,)
                       *, n_token_llama, canvas_size, dp, tn):
    i = pl.program_id(0)
    nt = pl.num_programs(0)
    slot = i & 1

    # --- per-row embedding gather for one tile into one scratch slot --------
    def issue_gather(tile, s):
        base = tile * tn
        row0 = s * tn

        @pl.loop(0, tn)
        def _(r):
            idx = llm_idx_ref[base + r]
            pltpu.make_async_copy(embed_hbm.at[pl.ds(idx, 1), :],
                                  gbuf.at[pl.ds(row0 + r, 1), :],
                                  sem.at[s]).start()

    # Prime this tile's gather on the first step only (its DMAs for later tiles
    # are issued one step ahead below).
    @pl.when(i == 0)
    def _():
        issue_gather(0, 0)

    # Cross-tile prefetch: start tile i+1's gather now so its HBM latency is
    # hidden behind this tile's wait + select + store.
    @pl.when(i + 1 < nt)
    def _():
        issue_gather(i + 1, 1 - slot)

    # --- bucket / clamp math (tiny) + fused 4-adapter GEMM ------------------
    # ids kept as a (TN, 1) column: that is the layout the angle broadcast and
    # the (TN, Dp) selects need, and it avoids an in-kernel lane->sublane
    # relayout; the per-token metadata is negligible traffic next to the
    # (TN, Dp) output tile.
    ids = ids_ref[...]                                       # (TN, 1) int32
    diff = ids - n_token_llama
    # torch: floor(int_tensor / int_scalar) -> float division then floor
    bucket = jnp.floor(diff.astype(jnp.float32) / float(canvas_size))
    added = jnp.where(diff < 0, 0, diff).astype(jnp.float32)  # (TN, 1)

    # SinusoidalPosEmb with num_steps == rescale_steps => identity rescale.
    ang = added * freqs_ref[...]                             # (TN, half) f32
    sv = jnp.sin(ang).astype(jnp.bfloat16)                   # sin/cos in f32, bf16 only for MXU
    cv = jnp.cos(ang).astype(jnp.bfloat16)
    fused = (jnp.dot(sv, wsin_ref[...], preferred_element_type=jnp.float32)
             + jnp.dot(cv, wcos_ref[...], preferred_element_type=jnp.float32)
             + bcat_ref[...])                                # (TN, 4*Dp) f32
    pos_x = fused[:, 0 * dp:1 * dp]
    pos_y = fused[:, 1 * dp:2 * dp]
    pos_w = fused[:, 2 * dp:3 * dp]
    pos_h = fused[:, 3 * dp:4 * dp]

    # --- drain this tile's gather (same-size descriptors; only sem/size matter),
    #     then per-bucket select and a lane-dense store.
    row0 = slot * tn

    @pl.loop(0, tn)
    def _(r):
        pltpu.make_async_copy(embed_hbm.at[pl.ds(0, 1), :],
                              gbuf.at[pl.ds(row0 + r, 1), :],
                              sem.at[slot]).wait()

    llm = gbuf[pl.ds(pl.multiple_of(row0, 8), tn), :]        # (TN, Dp) f32 llm_vec
    out = jnp.where(bucket == 0.0, pos_x, llm)
    out = jnp.where(bucket == 1.0, pos_y, out)
    out = jnp.where(bucket == 2.0, pos_w, out)
    out = jnp.where(bucket == 3.0, pos_h, out)
    out_ref[...] = out


def pos_adapter_forward(input_ids, params, *, n_token_llama, canvas_size,
                        sinusoidal_dim, tile_n=256):
    assert tile_n % 8 == 0
    B, S = input_ids.shape
    N = B * S
    embed = params["embed"].astype(jnp.float32)
    V, D = embed.shape

    Dp = ((D + 127) // 128) * 128                 # lane-dense output width
    TN = tile_n
    N_pad = ((N + TN - 1) // TN) * TN
    num_tiles = N_pad // TN

    ids = input_ids.reshape(N).astype(jnp.int32)
    ids = jnp.pad(ids, (0, N_pad - N))            # pad id 0 -> plain LLM-token path, sliced off later
    diff = ids - n_token_llama
    llm_idx = jnp.where(diff < 0, ids, 0)
    llm_idx = jnp.clip(llm_idx, 0, V - 1).astype(jnp.int32)   # OOB guard for the DMA gather
    ids_col = ids.reshape(N_pad, 1)

    half = sinusoidal_dim // 2
    scale = math.log(100.0) / (half - 1)
    freqs = jnp.exp(jnp.arange(half, dtype=jnp.float32) * -scale).reshape(1, half)

    # Fuse the four adapters into one weight / bias, padded to Dp lanes per adapter.
    # Split into sin-half / cos-half so the kernel never slices a packed bf16 tile.
    def pad_w(w):
        return jnp.pad(w.astype(jnp.float32), ((0, 0), (0, Dp - D)))

    def pad_b(b):
        return jnp.pad(b.reshape(1, D).astype(jnp.float32), ((0, 0), (0, Dp - D)))

    w_all = [pad_w(params[k]) for k in ("wx", "wy", "ww", "wh")]
    wsin = jnp.concatenate([w[:half] for w in w_all], axis=1).astype(jnp.bfloat16)
    wcos = jnp.concatenate([w[half:] for w in w_all], axis=1).astype(jnp.bfloat16)
    bcat = jnp.concatenate([pad_b(params[k]) for k in ("bx", "by", "bw", "bh")], axis=1)
    embed_p = jnp.pad(embed, ((0, 0), (0, Dp - D)))   # no-op when D % 128 == 0

    kernel = functools.partial(pos_adapter_kernel,
                               n_token_llama=n_token_llama,
                               canvas_size=canvas_size, dp=Dp, tn=TN)

    grid_spec = pltpu.PrefetchScalarGridSpec(
        num_scalar_prefetch=1,
        grid=(num_tiles,),
        in_specs=[
            pl.BlockSpec((TN, 1), lambda i, llm: (i, 0)),                 # ids tile (pipelined)
            pl.BlockSpec((1, half), lambda i, llm: (0, 0)),               # freqs    (resident)
            pl.BlockSpec((half, 4 * Dp), lambda i, llm: (0, 0)),          # fused Wsin (resident)
            pl.BlockSpec((half, 4 * Dp), lambda i, llm: (0, 0)),          # fused Wcos (resident)
            pl.BlockSpec((1, 4 * Dp), lambda i, llm: (0, 0)),             # fused bias (resident)
            pl.BlockSpec(memory_space=pl.ANY),                            # embed stays in HBM
        ],
        out_specs=pl.BlockSpec((TN, Dp), lambda i, llm: (i, 0)),
        scratch_shapes=[pltpu.VMEM((2 * TN, Dp), jnp.float32),            # double-buffered gather
                        pltpu.SemaphoreType.DMA((2,))],
    )

    out_pad = pl.pallas_call(
        kernel,
        out_shape=jax.ShapeDtypeStruct((N_pad, Dp), jnp.float32),
        grid_spec=grid_spec,
        compiler_params=pltpu.CompilerParams(
            # "arbitrary": the cross-tile gather prefetch requires sequential
            # grid execution on one core (a megacore split would leave the
            # second core's first tile un-primed and the first core's last
            # prefetch dangling).
            dimension_semantics=("arbitrary",),
            vmem_limit_bytes=32 * 1024 * 1024),
    )(llm_idx, ids_col, freqs, wsin, wcos, bcat, embed_p)

    return out_pad[:N, :D].reshape(B, S, D)


def pos_adapter_reference(input_ids, params, *, n_token_llama, canvas_size, sinusoidal_dim):
    """Pure-JAX reference (mirrors the kernel's bf16 MXU operands, f32 accumulate)."""
    ids = input_ids.astype(jnp.int32)
    diff = ids - n_token_llama
    bucket = jnp.floor(diff.astype(jnp.float32) / float(canvas_size))
    added = jnp.where(diff < 0, 0, diff).astype(jnp.float32)
    llm_idx = jnp.where(diff < 0, ids, 0)

    half = sinusoidal_dim // 2
    scale = math.log(100.0) / (half - 1)
    freqs = jnp.exp(jnp.arange(half, dtype=jnp.float32) * -scale)
    ang = added[..., None] * freqs[None, None, :]
    sin_vec = jnp.concatenate([jnp.sin(ang), jnp.cos(ang)], axis=-1).astype(jnp.bfloat16)

    def adapter(w, b):
        return jnp.dot(sin_vec, w.astype(jnp.bfloat16),
                       preferred_element_type=jnp.float32) + b

    pos_x = adapter(params["wx"], params["bx"])
    pos_y = adapter(params["wy"], params["by"])
    pos_w = adapter(params["ww"], params["bw"])
    pos_h = adapter(params["wh"], params["bh"])
    llm_vec = jnp.take(params["embed"].astype(jnp.float32), llm_idx, axis=0)

    out = jnp.where((bucket == 0.0)[..., None], pos_x, llm_vec)
    out = jnp.where((bucket == 1.0)[..., None], pos_y, out)
    out = jnp.where((bucket == 2.0)[..., None], pos_w, out)
    out = jnp.where((bucket == 3.0)[..., None], pos_h, out)
    return out


if __name__ == "__main__":
    # small, module-consistent shapes; S / tile_n chosen so the grid has two
    # tiles and the cross-tile prefetch path is actually exercised.
    B, S = 2, 16
    n_token_llama = 64
    canvas_size = 16
    token_dim = 32
    sinusoidal_dim = 16
    vocab = n_token_llama  # llm_embed vocabulary

    key = jax.random.PRNGKey(0)
    k_ids, k_emb, kx, kbx, ky, kby, kw, kbw, kh, kbh = jax.random.split(key, 10)

    # deterministic synthetic parameters (no checkpoint load)
    params = {
        "embed": jax.random.normal(k_emb, (vocab, token_dim), jnp.float32) * 0.02,
        "wx": jax.random.normal(kx, (sinusoidal_dim, token_dim), jnp.float32) * 0.1,
        "bx": jax.random.normal(kbx, (1, token_dim), jnp.float32) * 0.01,
        "wy": jax.random.normal(ky, (sinusoidal_dim, token_dim), jnp.float32) * 0.1,
        "by": jax.random.normal(kby, (1, token_dim), jnp.float32) * 0.01,
        "ww": jax.random.normal(kw, (sinusoidal_dim, token_dim), jnp.float32) * 0.1,
        "bw": jax.random.normal(kbw, (1, token_dim), jnp.float32) * 0.01,
        "wh": jax.random.normal(kh, (sinusoidal_dim, token_dim), jnp.float32) * 0.1,
        "bh": jax.random.normal(kbh, (1, token_dim), jnp.float32) * 0.01,
    }

    # input ids cover both LLM tokens (< n_token_llama) and the 4*canvas_size pos tokens
    input_ids = jax.random.randint(
        k_ids, (B, S), 0, n_token_llama + 4 * canvas_size, dtype=jnp.int32)

    out = pos_adapter_forward(input_ids, params,
                              n_token_llama=n_token_llama,
                              canvas_size=canvas_size,
                              sinusoidal_dim=sinusoidal_dim,
                              tile_n=16)
    out = jax.block_until_ready(out)

    ref = pos_adapter_reference(input_ids, params,
                                n_token_llama=n_token_llama,
                                canvas_size=canvas_size,
                                sinusoidal_dim=sinusoidal_dim)
    assert out.shape == (B, S, token_dim)
    # bf16 MXU operands (as recommended for v5e/v6e/v7x) => relaxed tolerance.
    assert jnp.allclose(out, ref, atol=1e-2, rtol=1e-2), "kernel mismatch vs reference"

    print("KERNEL_OK")
</pallas_src>

<mosaic_0001>
module attributes {stable_mosaic.version = 11 : i64} {
  func.func @pos_adapter_kernel(%arg0: i32, %arg1: memref<32xi32, #tpu.memory_space<smem>>, %arg2: memref<16x1xi32, #tpu.memory_space<vmem>>, %arg3: memref<1x8xf32, #tpu.memory_space<vmem>>, %arg4: memref<8x512xbf16, #tpu.memory_space<vmem>>, %arg5: memref<8x512xbf16, #tpu.memory_space<vmem>>, %arg6: memref<1x512xf32, #tpu.memory_space<vmem>>, %arg7: memref<64x128xf32, #tpu.memory_space<any>>, %arg8: memref<16x128xf32, #tpu.memory_space<vmem>>, %arg9: memref<32x128xf32, #tpu.memory_space<vmem>>, %arg10: memref<2x!tpu.dma_semaphore, #tpu.memory_space<semaphore_mem>>) attributes {dimension_semantics = [#tpu.dimension_semantics<arbitrary>], iteration_bounds = array<i64: 2>, scalar_prefetch = 1 : i64, scratch_operands = 2 : i64, tpu.core_type = #tpu.core_type<tc>, window_params = [{transform_indices = @transform_0, window_bounds = array<i64: 16, 1>}, {pipeline_mode = #tpu.pipeline_mode<synchronous>, transform_indices = @transform_1, window_bounds = array<i64: 1, 8>}, {pipeline_mode = #tpu.pipeline_mode<synchronous>, transform_indices = @transform_2, window_bounds = array<i64: 8, 512>}, {pipeline_mode = #tpu.pipeline_mode<synchronous>, transform_indices = @transform_3, window_bounds = array<i64: 8, 512>}, {pipeline_mode = #tpu.pipeline_mode<synchronous>, transform_indices = @transform_4, window_bounds = array<i64: 1, 512>}, {}, {transform_indices = @transform_6, window_bounds = array<i64: 16, 128>}]} {
    %c1_i32 = arith.constant 1 : i32
    %0 = arith.andi %arg0, %c1_i32 : i32
    %c0_i32 = arith.constant 0 : i32
    %1 = arith.cmpi eq, %arg0, %c0_i32 : i32
    %2 = arith.extui %1 : i1 to i32
    %c0_i32_0 = arith.constant 0 : i32
    %3 = arith.cmpi ne, %2, %c0_i32_0 : i32
    scf.if %3 {
      %c0_i32_27 = arith.constant 0 : i32
      %c16_i32_28 = arith.constant 16 : i32
      %66 = arith.addi %c0_i32_27, %c16_i32_28 : i32
      %c1_i32_29 = arith.constant 1 : i32
      scf.for %arg11 = %c0_i32_27 to %66 step %c1_i32_29  : i32 {
        %c1_i32_31 = arith.constant 1 : i32
        %67 = arith.muli %arg11, %c1_i32_31 : i32
        %c0_i32_32 = arith.constant 0 : i32
        %68 = arith.addi %c0_i32_32, %67 : i32
        %c0_i32_33 = arith.constant 0 : i32
        %69 = arith.addi %c0_i32_33, %68 : i32
        %70 = arith.index_cast %69 : i32 to index
        %71 = memref.load %arg1[%70] : memref<32xi32, #tpu.memory_space<smem>>
        %c0_i32_34 = arith.constant 0 : i32
        %72 = arith.addi %c0_i32_34, %68 : i32
        %c0_i32_35 = arith.constant 0 : i32
        %c0_i32_36 = arith.constant 0 : i32
        %73 = tpu.memref_slice %arg7[%71, %c0_i32_36] : memref<64x128xf32, #tpu.memory_space<any>> -> memref<1x128xf32, #tpu.memory_space<any>>
        %c0_i32_37 = arith.constant 0 : i32
        %74 = tpu.memref_slice %arg9[%72, %c0_i32_37] : memref<32x128xf32, #tpu.memory_space<vmem>> -> memref<1x128xf32, #tpu.memory_space<vmem>>
        %75 = tpu.memref_slice %arg10[%c0_i32_35] : memref<2x!tpu.dma_semaphore, #tpu.memory_space<semaphore_mem>> -> memref<1x!tpu.dma_semaphore, #tpu.memory_space<semaphore_mem>>
        %76 = tpu.memref_squeeze %75 : memref<1x!tpu.dma_semaphore, #tpu.memory_space<semaphore_mem>> -> memref<!tpu.dma_semaphore, #tpu.memory_space<semaphore_mem>>
        tpu.enqueue_dma source(%73 : memref<1x128xf32, #tpu.memory_space<any>>) target(%74 : memref<1x128xf32, #tpu.memory_space<vmem>>) target_semaphore(%76 : memref<!tpu.dma_semaphore, #tpu.memory_space<semaphore_mem>>)
      }
      %c16_i32_30 = arith.constant 16 : i32
    } else {
    }
    %c1_i32_1 = arith.constant 1 : i32
    %4 = arith.addi %arg0, %c1_i32_1 : i32
    %c2_i32 = arith.constant 2 : i32
    %5 = arith.cmpi slt, %4, %c2_i32 : i32
    %6 = arith.extui %5 : i1 to i32
    %c0_i32_2 = arith.constant 0 : i32
    %7 = arith.cmpi ne, %6, %c0_i32_2 : i32
    scf.if %7 {
      %c1_i32_27 = arith.constant 1 : i32
      %66 = arith.addi %arg0, %c1_i32_27 : i32
      %c1_i32_28 = arith.constant 1 : i32
      %67 = arith.subi %c1_i32_28, %0 : i32
      %c16_i32_29 = arith.constant 16 : i32
      %68 = arith.muli %66, %c16_i32_29 : i32
      %c16_i32_30 = arith.constant 16 : i32
      %69 = arith.muli %67, %c16_i32_30 : i32
      %c0_i32_31 = arith.constant 0 : i32
      %c16_i32_32 = arith.constant 16 : i32
      %70 = arith.addi %c0_i32_31, %c16_i32_32 : i32
      %c1_i32_33 = arith.constant 1 : i32
      scf.for %arg11 = %c0_i32_31 to %70 step %c1_i32_33  : i32 {
        %c1_i32_35 = arith.constant 1 : i32
        %71 = arith.muli %arg11, %c1_i32_35 : i32
        %c0_i32_36 = arith.constant 0 : i32
        %72 = arith.addi %c0_i32_36, %71 : i32
        %73 = arith.addi %68, %72 : i32
        %74 = arith.index_cast %73 : i32 to index
        %75 = memref.load %arg1[%74] : memref<32xi32, #tpu.memory_space<smem>>
        %76 = arith.addi %69, %72 : i32
        %c0_i32_37 = arith.constant 0 : i32
        %77 = tpu.memref_slice %arg7[%75, %c0_i32_37] : memref<64x128xf32, #tpu.memory_space<any>> -> memref<1x128xf32, #tpu.memory_space<any>>
        %c0_i32_38 = arith.constant 0 : i32
        %78 = tpu.memref_slice %arg9[%76, %c0_i32_38] : memref<32x128xf32, #tpu.memory_space<vmem>> -> memref<1x128xf32, #tpu.memory_space<vmem>>
        %79 = tpu.memref_slice %arg10[%67] : memref<2x!tpu.dma_semaphore, #tpu.memory_space<semaphore_mem>> -> memref<1x!tpu.dma_semaphore, #tpu.memory_space<semaphore_mem>>
        %80 = tpu.memref_squeeze %79 : memref<1x!tpu.dma_semaphore, #tpu.memory_space<semaphore_mem>> -> memref<!tpu.dma_semaphore, #tpu.memory_space<semaphore_mem>>
        tpu.enqueue_dma source(%77 : memref<1x128xf32, #tpu.memory_space<any>>) target(%78 : memref<1x128xf32, #tpu.memory_space<vmem>>) target_semaphore(%80 : memref<!tpu.dma_semaphore, #tpu.memory_space<semaphore_mem>>)
      }
      %c16_i32_34 = arith.constant 16 : i32
    } else {
    }
    %c0 = arith.constant 0 : index
    %c0_3 = arith.constant 0 : index
    %8 = vector.load %arg2[%c0, %c0_3] : memref<16x1xi32, #tpu.memory_space<vmem>>, vector<16x1xi32>
    %c64_i32 = arith.constant 64 : i32
    %9 = vector.broadcast %c64_i32 : i32 to vector<16x1xi32>
    %10 = arith.subi %8, %9 : vector<16x1xi32>
    %11 = arith.sitofp %10 : vector<16x1xi32> to vector<16x1xf32>
    %cst = arith.constant 1.600000e+01 : f32
    %12 = vector.broadcast %cst : f32 to vector<16x1xf32>
    %13 = arith.divf %11, %12 : vector<16x1xf32>
    %14 = math.floor %13 : vector<16x1xf32>
    %c0_i32_4 = arith.constant 0 : i32
    %15 = vector.broadcast %c0_i32_4 : i32 to vector<16x1xi32>
    %16 = arith.cmpi slt, %10, %15 : vector<16x1xi32>
    %c0_i32_5 = arith.constant 0 : i32
    %17 = vector.broadcast %c0_i32_5 : i32 to vector<16x1xi32>
    %18 = arith.select %16, %17, %10 : vector<16x1xi1>, vector<16x1xi32>
    %19 = arith.sitofp %18 : vector<16x1xi32> to vector<16x1xf32>
    %c0_6 = arith.constant 0 : index
    %c0_7 = arith.constant 0 : index
    %20 = vector.load %arg3[%c0_6, %c0_7] : memref<1x8xf32, #tpu.memory_space<vmem>>, vector<1x8xf32>
    %21 = vector.broadcast %19 : vector<16x1xf32> to vector<16x8xf32>
    %22 = vector.broadcast %20 : vector<1x8xf32> to vector<16x8xf32>
    %23 = arith.mulf %21, %22 : vector<16x8xf32>
    %24 = math.sin %23 : vector<16x8xf32>
    %25 = arith.truncf %24 : vector<16x8xf32> to vector<16x8xbf16>
    %26 = math.cos %23 : vector<16x8xf32>
    %27 = arith.truncf %26 : vector<16x8xf32> to vector<16x8xbf16>
    %c0_8 = arith.constant 0 : index
    %c0_9 = arith.constant 0 : index
    %28 = vector.load %arg4[%c0_8, %c0_9] : memref<8x512xbf16, #tpu.memory_space<vmem>>, vector<8x512xbf16>
    %cst_10 = arith.constant dense<0.000000e+00> : vector<16x512xf32>
    %29 = tpu.matmul %25, %28, %cst_10 {dimension_numbers = #tpu.dot_dimension_numbers<[1], [0], [0], [1], [0, 0, 1, 1], [], []>} : vector<16x8xbf16>, vector<8x512xbf16>, vector<16x512xf32> -> vector<16x512xf32>
    %c0_11 = arith.constant 0 : index
    %c0_12 = arith.constant 0 : index
    %30 = vector.load %arg5[%c0_11, %c0_12] : memref<8x512xbf16, #tpu.memory_space<vmem>>, vector<8x512xbf16>
    %cst_13 = arith.constant dense<0.000000e+00> : vector<16x512xf32>
    %31 = tpu.matmul %27, %30, %cst_13 {dimension_numbers = #tpu.dot_dimension_numbers<[1], [0], [0], [1], [0, 0, 1, 1], [], []>} : vector<16x8xbf16>, vector<8x512xbf16>, vector<16x512xf32> -> vector<16x512xf32>
    %32 = arith.addf %29, %31 : vector<16x512xf32>
    %c0_14 = arith.constant 0 : index
    %c0_15 = arith.constant 0 : index
    %33 = vector.load %arg6[%c0_14, %c0_15] : memref<1x512xf32, #tpu.memory_space<vmem>>, vector<1x512xf32>
    %34 = vector.broadcast %33 : vector<1x512xf32> to vector<16x512xf32>
    %35 = arith.addf %32, %34 : vector<16x512xf32>
    %36 = vector.extract_strided_slice %35 {offsets = [0, 0], sizes = [16, 128], strides = [1, 1]} : vector<16x512xf32> to vector<16x128xf32>
    %37 = vector.extract_strided_slice %35 {offsets = [0, 128], sizes = [16, 128], strides = [1, 1]} : vector<16x512xf32> to vector<16x128xf32>
    %38 = vector.extract_strided_slice %35 {offsets = [0, 256], sizes = [16, 128], strides = [1, 1]} : vector<16x512xf32> to vector<16x128xf32>
    %39 = vector.extract_strided_slice %35 {offsets = [0, 384], sizes = [16, 128], strides = [1, 1]} : vector<16x512xf32> to vector<16x128xf32>
    %c16_i32 = arith.constant 16 : i32
    %40 = arith.muli %0, %c16_i32 : i32
    %c0_i32_16 = arith.constant 0 : i32
    %c16_i32_17 = arith.constant 16 : i32
    %41 = arith.addi %c0_i32_16, %c16_i32_17 : i32
    %c1_i32_18 = arith.constant 1 : i32
    scf.for %arg11 = %c0_i32_16 to %41 step %c1_i32_18  : i32 {
      %c1_i32_27 = arith.constant 1 : i32
      %66 = arith.muli %arg11, %c1_i32_27 : i32
      %c0_i32_28 = arith.constant 0 : i32
      %67 = arith.addi %c0_i32_28, %66 : i32
      %68 = arith.addi %40, %67 : i32
      %c0_i32_29 = arith.constant 0 : i32
      %c0_i32_30 = arith.constant 0 : i32
      %69 = tpu.memref_slice %arg7[%c0_i32_29, %c0_i32_30] : memref<64x128xf32, #tpu.memory_space<any>> -> memref<1x128xf32, #tpu.memory_space<any>>
      %c0_i32_31 = arith.constant 0 : i32
      %70 = tpu.memref_slice %arg9[%68, %c0_i32_31] : memref<32x128xf32, #tpu.memory_space<vmem>> -> memref<1x128xf32, #tpu.memory_space<vmem>>
      %71 = tpu.memref_slice %arg10[%0] : memref<2x!tpu.dma_semaphore, #tpu.memory_space<semaphore_mem>> -> memref<1x!tpu.dma_semaphore, #tpu.memory_space<semaphore_mem>>
      %72 = tpu.memref_squeeze %71 : memref<1x!tpu.dma_semaphore, #tpu.memory_space<semaphore_mem>> -> memref<!tpu.dma_semaphore, #tpu.memory_space<semaphore_mem>>
      tpu.wait_dma2 semaphore(%72 : memref<!tpu.dma_semaphore, #tpu.memory_space<semaphore_mem>>) src(%69 : memref<1x128xf32, #tpu.memory_space<any>>) dst(%70 : memref<1x128xf32, #tpu.memory_space<vmem>>)
    }
    %c16_i32_19 = arith.constant 16 : i32
    %42 = tpu.assume_multiple %40, 8 : i32
    %43 = arith.index_cast %42 : i32 to index
    %c0_20 = arith.constant 0 : index
    %44 = vector.load %arg9[%43, %c0_20] : memref<32x128xf32, #tpu.memory_space<vmem>>, vector<16x128xf32>
    %cst_21 = arith.constant 0.000000e+00 : f32
    %45 = vector.broadcast %cst_21 : f32 to vector<16x1xf32>
    %46 = arith.cmpf oeq, %14, %45 : vector<16x1xf32>
    %47 = vector.shape_cast %46 : vector<16x1xi1> to vector<16x1xi1>
    %48 = vector.broadcast %47 : vector<16x1xi1> to vector<16x128xi1>
    %49 = arith.select %48, %36, %44 : vector<16x128xi1>, vector<16x128xf32>
    %cst_22 = arith.constant 1.000000e+00 : f32
    %50 = vector.broadcast %cst_22 : f32 to vector<16x1xf32>
    %51 = arith.cmpf oeq, %14, %50 : vector<16x1xf32>
    %52 = vector.shape_cast %51 : vector<16x1xi1> to vector<16x1xi1>
    %53 = vector.broadcast %52 : vector<16x1xi1> to vector<16x128xi1>
    %54 = arith.select %53, %37, %49 : vector<16x128xi1>, vector<16x128xf32>
    %cst_23 = arith.constant 2.000000e+00 : f32
    %55 = vector.broadcast %cst_23 : f32 to vector<16x1xf32>
    %56 = arith.cmpf oeq, %14, %55 : vector<16x1xf32>
    %57 = vector.shape_cast %56 : vector<16x1xi1> to vector<16x1xi1>
    %58 = vector.broadcast %57 : vector<16x1xi1> to vector<16x128xi1>
    %59 = arith.select %58, %38, %54 : vector<16x128xi1>, vector<16x128xf32>
    %cst_24 = arith.constant 3.000000e+00 : f32
    %60 = vector.broadcast %cst_24 : f32 to vector<16x1xf32>
    %61 = arith.cmpf oeq, %14, %60 : vector<16x1xf32>
    %62 = vector.shape_cast %61 : vector<16x1xi1> to vector<16x1xi1>
    %63 = vector.broadcast %62 : vector<16x1xi1> to vector<16x128xi1>
    %64 = arith.select %63, %39, %59 : vector<16x128xi1>, vector<16x128xf32>
    %c0_25 = arith.constant 0 : index
    %c0_26 = arith.constant 0 : index
    %65 = vector.load %arg8[%c0_25, %c0_26] : memref<16x128xf32, #tpu.memory_space<vmem>>, vector<16x128xf32>
    tpu.vector_store %arg8[%c0_25, %c0_26], %64 {strides = array<i32>} : memref<16x128xf32, #tpu.memory_space<vmem>>, vector<16x128xf32>,
    return
  }
  func.func @transform_0(%arg0: i32, %arg1: memref<32xi32, #tpu.memory_space<smem>>) -> (i32, i32) {
    %c0_i32 = arith.constant 0 : i32
    %c0_i32_0 = arith.constant 0 : i32
    return %arg0, %c0_i32 : i32, i32
  }
  func.func @transform_1(%arg0: i32, %arg1: memref<32xi32, #tpu.memory_space<smem>>) -> (i32, i32) {
    %c0_i32 = arith.constant 0 : i32
    %c0_i32_0 = arith.constant 0 : i32
    %c0_i32_1 = arith.constant 0 : i32
    return %c0_i32, %c0_i32_0 : i32, i32
  }
  func.func @transform_2(%arg0: i32, %arg1: memref<32xi32, #tpu.memory_space<smem>>) -> (i32, i32) {
    %c0_i32 = arith.constant 0 : i32
    %c0_i32_0 = arith.constant 0 : i32
    %c0_i32_1 = arith.constant 0 : i32
    return %c0_i32, %c0_i32_0 : i32, i32
  }
  func.func @transform_3(%arg0: i32, %arg1: memref<32xi32, #tpu.memory_space<smem>>) -> (i32, i32) {
    %c0_i32 = arith.constant 0 : i32
    %c0_i32_0 = arith.constant 0 : i32
    %c0_i32_1 = arith.constant 0 : i32
    return %c0_i32, %c0_i32_0 : i32, i32
  }
  func.func @transform_4(%arg0: i32, %arg1: memref<32xi32, #tpu.memory_space<smem>>) -> (i32, i32) {
    %c0_i32 = arith.constant 0 : i32
    %c0_i32_0 = arith.constant 0 : i32
    %c0_i32_1 = arith.constant 0 : i32
    return %c0_i32, %c0_i32_0 : i32, i32
  }
  func.func @transform_6(%arg0: i32, %arg1: memref<32xi32, #tpu.memory_space<smem>>) -> (i32, i32) {
    %c0_i32 = arith.constant 0 : i32
    %c0_i32_0 = arith.constant 0 : i32
    return %arg0, %c0_i32 : i32, i32
  }
}

</mosaic_0001>

<llo_original>
// kernel: tpu_custom_call.1
$region0: #{tpu_custom_call.1}
  #allocation0 [shape = 'u32[]', space=smem, size = 0x4, offset = 0x4, fixed_abs, tag = 'smem constant byte address 0x4 - core index']
  #allocation1 [shape = 'u32[144,128]{1,0:T(1,128)}', space=vmem, size = 0x12000, scoped, tag = 'internal scratch']
  #allocation2 [shape = 'f32[32,128]{1,0:T(8,128)}', space=vmem, size = 0x4000, scoped, tag = 'scratch operand']
  #allocation3 [shape = 's32[2]{0}', space=sflag, size = 0x8, scoped, tag = 'scratch operand']
  #allocation4 [shape = 's32[1]{0}', space=sflag, size = 0x4, scoped, tag = 'scoped memory for tpu_custom_call.1']
  #allocation5 [shape = 'u8[512]{0}', space=smem, size = 0x200, scoped, tag = 'prefetched SMEM operand 0']
  #allocation8 [shape = 's32[]', space=sflag, size = 0x4, offset = 0, fixed_abs, tag = 'sflag constant byte address 0x0 - dummy sync flag']
  #allocation9 [shape = 's32[]', space=sflag, size = 0x4, offset = 0, fixed_abs, tag = 'sflag constant byte address 0x0 - dummy sync flag']
  #allocation10 [shape = 'u32[]', space=smem, size = 0x4, offset = 0x44, fixed_abs, tag = 'smem constant byte address 0x44 - assertion arg 0']
  #allocation11 [shape = 'u32[]', space=smem, size = 0x4, offset = 0x48, fixed_abs, tag = 'smem constant byte address 0x48 - assertion arg 1']
  #allocation12 [shape = 's32[]', space=sflag, size = 0x4, offset = 0, fixed_abs, tag = 'sflag constant byte address 0x0 - dummy sync flag']
  #allocation13 [shape = 's32[]', space=sflag, size = 0x4, offset = 0, fixed_abs, tag = 'sflag constant byte address 0x0 - dummy sync flag']
  %s0 = inlined_call_operand.hbm [shape: s32[32], index: 0, kind: input, shape index: {}]
  %s1 = inlined_call_operand.vmem [shape: s32[32,1], index: 1, kind: input, shape index: {}]
  %s2 = inlined_call_operand.vmem [shape: f32[1,8], index: 2, kind: input, shape index: {}]
  %s3 = inlined_call_operand.vmem [shape: bf16[8,512], index: 3, kind: input, shape index: {}]
  %s4 = inlined_call_operand.vmem [shape: bf16[8,512], index: 4, kind: input, shape index: {}]
  %s5 = inlined_call_operand.vmem [shape: f32[1,512], index: 5, kind: input, shape index: {}]
  %s6 = inlined_call_operand.hbm [shape: f32[64,128], index: 6, kind: input, shape index: {}]
  %s7 = inlined_call_operand.hbm [shape: f32[32,128], index: 7, kind: output, shape index: {}]
  %s8 = sld [smem:[#allocation0]]
  $region90: #{tpu_custom_call.1} parent=0
    _
  %s10 = ssub.s32 1, %s8
  %s11 = scalar_select 0, %s10, %s8
  %13 = dma.hbm_to_smem %s0, 16, [#allocation5], [#allocation4]
  %14 = dma.done [#allocation4], 16
  %15 = sfence
  $region1: #{tpu_custom_call.1} parent=0
    #allocation6 [shape = 'u8[16384]{0}', space=vmem, size = 0x4000, scoped, tag = 'output window, operand 0']
    #allocation7 [shape = 's32[2]{0}', space=sflag, size = 0x8, scoped, tag = 'scoped memory for tpu_custom_call.1']
    %16 = vsyncpa [#allocation7], 0
    %s17 = scalar_lea.sflag [#allocation7], 1
    %18 = vsyncpa %s17, 0
    loop: start=0, step=1, limit=4
    $region2: #{tpu_custom_call.1} parent=1 // loop_pre_header
      _
    $region3: #{tpu_custom_call.1} parent=1 // loop_header
      %s20 = sphi 0, %s24
      %p21 = scmp.ge.s32.totalorder %s20, 4
      %s30 = sphi 0, %s32
      %s33 = sphi 0, %s30
      %s34 = sphi 0, %s33
      %s50 = sphi 0, %s34
      %s54 = sphi 0, %s54
      %s56 = sphi 0, %s54
      %s57 = sphi 0, %s56
      %s71 = sphi 0, %s57
      %s75 = sphi 0, %s75
      %s77 = sphi 0, %s75
      %s78 = sphi 0, %s77
      %s92 = sphi 0, %s78
      %s96 = sphi 0, %s96
      %s98 = sphi 0, %s96
      %s99 = sphi 0, %s98
      %s113 = sphi 0, %s99
      %s117 = sphi 0, %s117
      %s119 = sphi 0, %s117
      %s120 = sphi 0, %s119
      %s134 = sphi 0, %s120
      %s140 = sphi 0, %s142
      %s143 = sphi 0, %s140
      %s144 = sphi 0, %s143
      %s160 = sphi 0, %s144
    $region4: #{tpu_custom_call.1} parent=1 // loop_header_branch
      %23 = sbr.rel (%p21) target = $region8
    $region5: #{tpu_custom_call.1} parent=1 // loop_body
      %s25 = ssub.s32 %s20, 1
      %s26 = ssub.s32 %s20, 2
      %s27 = sadd.s32 %s20, 1
      %s28 = ssub.s32 %s20, %s27
      %p29 = scmp.eq.s32.totalorder %s28, 0
      %s31 = sadd.s32 %s30, 1
      %s32 = scalar_select %p29, %s30, %s31
      %p35 = pneg %p29
      %p36 = scmp.eq.s32.totalorder %s20, 1
      %p37 = por %p35, %p36
      %p38 = scmp.ne.s32.totalorder %s30, %s33
      %p39 = scmp.eq.s32.totalorder %s20, 0
      %p40 = por %p38, %p39
      %p41 = scmp.ne.s32.totalorder %s30, %s33
      %p42 = scmp.eq.s32.totalorder %s25, 1
      %p43 = por %p41, %p42
      %p44 = scmp.ne.s32.totalorder %s33, %s34
      %p45 = scmp.eq.s32.totalorder %s25, 0
      %p46 = por %p44, %p45
      %p47 = scmp.ne.s32.totalorder %s33, %s34
      %p48 = scmp.eq.s32.totalorder %s26, 1
      %p49 = por %p47, %p48
      %p51 = scmp.ne.s32.totalorder %s34, %s50
      %p52 = scmp.eq.s32.totalorder %s26, 0
      %p53 = por %p51, %p52
      %s55 = sadd.s32 %s54, 1
      %p58 = scmp.eq.s32.totalorder %s20, 1
      %p59 = scmp.ne.s32.totalorder %s54, %s56
      %p60 = scmp.eq.s32.totalorder %s20, 0
      %p61 = por %p59, %p60
      %p62 = scmp.ne.s32.totalorder %s54, %s56
      %p63 = scmp.eq.s32.totalorder %s25, 1
      %p64 = por %p62, %p63
      %p65 = scmp.ne.s32.totalorder %s56, %s57
      %p66 = scmp.eq.s32.totalorder %s25, 0
      %p67 = por %p65, %p66
      %p68 = scmp.ne.s32.totalorder %s56, %s57
      %p69 = scmp.eq.s32.totalorder %s26, 1
      %p70 = por %p68, %p69
      %p72 = scmp.ne.s32.totalorder %s57, %s71
      %p73 = scmp.eq.s32.totalorder %s26, 0
      %p74 = por %p72, %p73
      %s76 = sadd.s32 %s75, 1
      %p79 = scmp.eq.s32.totalorder %s20, 1
      %p80 = scmp.ne.s32.totalorder %s75, %s77
      %p81 = scmp.eq.s32.totalorder %s20, 0
      %p82 = por %p80, %p81
      %p83 = scmp.ne.s32.totalorder %s75, %s77
      %p84 = scmp.eq.s32.totalorder %s25, 1
      %p85 = por %p83, %p84
      %p86 = scmp.ne.s32.totalorder %s77, %s78
      %p87 = scmp.eq.s32.totalorder %s25, 0
      %p88 = por %p86, %p87
      %p89 = scmp.ne.s32.totalorder %s77, %s78
      %p90 = scmp.eq.s32.totalorder %s26, 1
      %p91 = por %p89, %p90
      %p93 = scmp.ne.s32.totalorder %s78, %s92
      %p94 = scmp.eq.s32.totalorder %s26, 0
      %p95 = por %p93, %p94
      %s97 = sadd.s32 %s96, 1
      %p100 = scmp.eq.s32.totalorder %s20, 1
      %p101 = scmp.ne.s32.totalorder %s96, %s98
      %p102 = scmp.eq.s32.totalorder %s20, 0
      %p103 = por %p101, %p102
      %p104 = scmp.ne.s32.totalorder %s96, %s98
      %p105 = scmp.eq.s32.totalorder %s25, 1
      %p106 = por %p104, %p105
      %p107 = scmp.ne.s32.totalorder %s98, %s99
      %p108 = scmp.eq.s32.totalorder %s25, 0
      %p109 = por %p107, %p108
      %p110 = scmp.ne.s32.totalorder %s98, %s99
      %p111 = scmp.eq.s32.totalorder %s26, 1
      %p112 = por %p110, %p111
      %p114 = scmp.ne.s32.totalorder %s99, %s113
      %p115 = scmp.eq.s32.totalorder %s26, 0
      %p116 = por %p114, %p115
      %s118 = sadd.s32 %s117, 1
      %p121 = scmp.eq.s32.totalorder %s20, 1
      %p122 = scmp.ne.s32.totalorder %s117, %s119
      %p123 = scmp.eq.s32.totalorder %s20, 0
      %p124 = por %p122, %p123
      %p125 = scmp.ne.s32.totalorder %s117, %s119
      %p126 = scmp.eq.s32.totalorder %s25, 1
      %p127 = por %p125, %p126
      %p128 = scmp.ne.s32.totalorder %s119, %s120
      %p129 = scmp.eq.s32.totalorder %s25, 0
      %p130 = por %p128, %p129
      %p131 = scmp.ne.s32.totalorder %s119, %s120
      %p132 = scmp.eq.s32.totalorder %s26, 1
      %p133 = por %p131, %p132
      %p135 = scmp.ne.s32.totalorder %s120, %s134
      %p136 = scmp.eq.s32.totalorder %s26, 0
      %p137 = por %p135, %p136
      %s138 = ssub.s32 %s20, %s27
      %p139 = scmp.eq.s32.totalorder %s138, 0
      %s141 = sadd.s32 %s140, 1
      %s142 = scalar_select %p139, %s140, %s141
      %p145 = pneg %p139
      %p146 = scmp.eq.s32.totalorder %s20, 1
      %p147 = por %p145, %p146
      %p148 = scmp.ne.s32.totalorder %s140, %s143
      %p149 = scmp.eq.s32.totalorder %s20, 0
      %p150 = por %p148, %p149
      %p151 = scmp.ne.s32.totalorder %s140, %s143
      %p152 = scmp.eq.s32.totalorder %s25, 1
      %p153 = por %p151, %p152
      %p154 = scmp.ne.s32.totalorder %s143, %s144
      %p155 = scmp.eq.s32.totalorder %s25, 0
      %p156 = por %p154, %p155
      %p157 = scmp.ne.s32.totalorder %s143, %s144
      %p158 = scmp.eq.s32.totalorder %s26, 1
      %p159 = por %p157, %p158
      %p161 = scmp.ne.s32.totalorder %s144, %s160
      %p162 = scmp.eq.s32.totalorder %s26, 0
      %p163 = por %p161, %p162
      %p164 = scmp.le.s32.totalorder 1, %s20
      %p165 = scmp.lt.s32.totalorder %s20, 3
      %p166 = pnand %p164, %p165
      %p167 = pneg %p166
      // Predicated region
      $region9: #{tpu_custom_call.1} parent=5 // pred_check
        _
      $region10: #{tpu_custom_call.1} parent=5 // pred_check_branch
        %169 = sbr.rel (%p166) target = $region12
      $region11: #{tpu_custom_call.1} parent=5 // pred_region
        %s170 = ssub.s32 %s20, 1
        // Predicated region
        $region13: #{tpu_custom_call.1} parent=11 // pred_check
          %p171 = pneg %p67
        $region14: #{tpu_custom_call.1} parent=11 // pred_check_branch
          %173 = sbr.rel (%p171) target = $region16
        $region15: #{tpu_custom_call.1} parent=11 // pred_region
          _
        $region16: #{tpu_custom_call.1} parent=11 // pred_fallthru
          _
        // Predicated region
        $region17: #{tpu_custom_call.1} parent=11 // pred_check
          %p174 = pneg %p88
        $region18: #{tpu_custom_call.1} parent=11 // pred_check_branch
          %176 = sbr.rel (%p174) target = $region20
        $region19: #{tpu_custom_call.1} parent=11 // pred_region
          _
        $region20: #{tpu_custom_call.1} parent=11 // pred_fallthru
          _
        // Predicated region
        $region21: #{tpu_custom_call.1} parent=11 // pred_check
          %p177 = pneg %p109
        $region22: #{tpu_custom_call.1} parent=11 // pred_check_branch
          %179 = sbr.rel (%p177) target = $region24
        $region23: #{tpu_custom_call.1} parent=11 // pred_region
          _
        $region24: #{tpu_custom_call.1} parent=11 // pred_fallthru
          _
        // Predicated region
        $region25: #{tpu_custom_call.1} parent=11 // pred_check
          %p180 = pneg %p130
        $region26: #{tpu_custom_call.1} parent=11 // pred_check_branch
          %182 = sbr.rel (%p180) target = $region28
        $region27: #{tpu_custom_call.1} parent=11 // pred_region
          _
        $region28: #{tpu_custom_call.1} parent=11 // pred_fallthru
          _
      $region12: #{tpu_custom_call.1} parent=5 // pred_fallthru
        _
      %p183 = scmp.lt.s32.totalorder %s20, 2
      // Predicated region
      $region29: #{tpu_custom_call.1} parent=5 // pred_check
        %p184 = pneg %p183
      $region30: #{tpu_custom_call.1} parent=5 // pred_check_branch
        %186 = sbr.rel (%p184) target = $region32
      $region31: #{tpu_custom_call.1} parent=5 // pred_region
        // Predicated region
        $region33: #{tpu_custom_call.1} parent=31 // pred_check
          %p187 = pneg %p40
        $region34: #{tpu_custom_call.1} parent=31 // pred_check_branch
          %189 = sbr.rel (%p187) target = $region36
        $region35: #{tpu_custom_call.1} parent=31 // pred_region
          %s190 = smul.u32 2, %s20
          %p191 = scmp.lt.s32.totalorder %s190, 3
          %s192 = scalar_select %p191, %s190, 3
          %s193 = smul.addr %s192, 8
          %s194 = scalar_lea.vmem %s1, %s193
          %s195 = smul.u32 2, %s20
        $region36: #{tpu_custom_call.1} parent=31 // pred_fallthru
          _
      $region32: #{tpu_custom_call.1} parent=5 // pred_fallthru
        _
      %p196 = scmp.le.s32.totalorder 1, %s20
      %p197 = scmp.lt.s32.totalorder %s20, 3
      %p198 = pnand %p196, %p197
      %p199 = pneg %p198
      // Predicated region
      $region37: #{tpu_custom_call.1} parent=5 // pred_check
        _
      $region38: #{tpu_custom_call.1} parent=5 // pred_check_branch
        %201 = sbr.rel (%p198) target = $region40
      $region39: #{tpu_custom_call.1} parent=5 // pred_region
        %s202 = ssub.s32 %s20, 1
        %s203 = smul.u32 2, %s25
        %p204 = scmp.lt.s32.totalorder %s203, 3
        %s205 = scalar_select %p204, %s203, 3
        %s206 = smul.addr %s205, 8
        %s207 = scalar_lea.vmem %s1, %s206
        %p208 = pneg %p46
        %p209 = pneg %p43
        %p210 = pneg %p67
        %p211 = pneg %p64
        %p212 = pneg %p88
        %p213 = pneg %p85
        %p214 = pneg %p109
        %p215 = pneg %p106
        %p216 = pneg %p130
        %p217 = pneg %p127
        %p218 = pneg %p156
        %p219 = pneg %p153
        %s220 = sand.u32 %s143, 1
        %s221 = scalar_lea.sflag [#allocation7], %s220
        %s222 = sand.u32 %s143, 1
        %s223 = smul.addr %s222, 16
        %s224 = scalar_lea.vmem [#allocation6], %s223
        %s225 = smul.u32 2, %s25
        %p226 = scmp.lt.s32.totalorder %s225, 3
        %s227 = scalar_select %p226, %s225, 3
        %s228 = smul.addr %s227, 8
        %s229 = scalar_lea.vmem %s1, %s228
        %s230 = smul.u32 2, %s25
        %s231 = smul.u32 2, %s25
        %s233 = sand.u32 %s25, 1
        %p234 = scmp.eq.s32.totalorder %s25, 0
        // Predicated region
        $region41: #{tpu_custom_call.1} parent=39 // pred_check
          %p235 = pneg %p234
        $region42: #{tpu_custom_call.1} parent=39 // pred_check_branch
          %237 = sbr.rel (%p235) target = $region44
        $region43: #{tpu_custom_call.1} parent=39 // pred_region
          loop: start=0, step=1, limit=16
          $region45: #{tpu_custom_call.1} parent=43 // loop_pre_header
            _
          $region46: #{tpu_custom_call.1} parent=43 // loop_header
            %s239 = sphi 0, %s243
            %p240 = scmp.ge.s32.totalorder %s239, 16
          $region47: #{tpu_custom_call.1} parent=43 // loop_header_branch
            %242 = sbr.rel (%p240) target = $region51
          $region48: #{tpu_custom_call.1} parent=43 // loop_body
            %s244 = sld [smem:[#allocation5 + %s239]]
            %s245 = smul.addr %s244, 16
            %s246 = scalar_lea.hbm %s6, %s245
            %s247 = scalar_lea.vmem [#allocation2], %s239
            // Predicated region
            $region52: #{tpu_custom_call.1} parent=48 // pred_check
              _
            $region53: #{tpu_custom_call.1} parent=48 // pred_check_branch
              %249 = sbr.rel target = $region55
            $region54: #{tpu_custom_call.1} parent=48 // pred_region
              %250 = sst [smem:[#allocation10]] [#allocation9]
              %251 = sst [smem:[#allocation11]] [#allocation8]
            $region55: #{tpu_custom_call.1} parent=48 // pred_fallthru
              _
            %253 = shalt.err (0)
            %s255 = sshll.u32 %s247, 4
            %s256 = int_to_ptr.vmem [resolvable:$true] %s255
            %258 = dma.hbm_to_vmem [thread:$0]  %s246, 16, %s256, [#allocation3]
          $region49: #{tpu_custom_call.1} parent=43 // loop_footer
            %s243 = sadd.s32 1, %s239
          $region50: #{tpu_custom_call.1} parent=43 // loop_footer_branch
            %238 = sbr.rel target = $region46
          $region51: #{tpu_custom_call.1} parent=43 // loop_exit
            _
        $region44: #{tpu_custom_call.1} parent=39 // pred_fallthru
          _
        %s259 = sadd.s32 %s25, 1
        %p260 = scmp.lt.s32.totalorder %s259, 2
        // Predicated region
        $region56: #{tpu_custom_call.1} parent=39 // pred_check
          %p261 = pneg %p260
        $region57: #{tpu_custom_call.1} parent=39 // pred_check_branch
          %263 = sbr.rel (%p261) target = $region59
        $region58: #{tpu_custom_call.1} parent=39 // pred_region
          %s264 = ssub.s32 1, %s233
          %s265 = smul.u32 %s259, 16
          %s266 = smul.u32 %s264, 16
          loop: start=0, step=1, limit=16
          $region60: #{tpu_custom_call.1} parent=58 // loop_pre_header
            _
          $region61: #{tpu_custom_call.1} parent=58 // loop_header
            %s268 = sphi 0, %s272
            %p269 = scmp.ge.s32.totalorder %s268, 16
          $region62: #{tpu_custom_call.1} parent=58 // loop_header_branch
            %271 = sbr.rel (%p269) target = $region66
          $region63: #{tpu_custom_call.1} parent=58 // loop_body
            %s273 = sadd.s32 %s265, %s268
            %s274 = sld [smem:[#allocation5 + %s273]]
            %s275 = sadd.s32 %s266, %s268
            %s276 = smul.addr %s274, 16
            %s277 = scalar_lea.hbm %s6, %s276
            %s278 = scalar_lea.vmem [#allocation2], %s275
            %s279 = scalar_lea.sflag [#allocation3], %s264
            // Predicated region
            $region67: #{tpu_custom_call.1} parent=63 // pred_check
              _
            $region68: #{tpu_custom_call.1} parent=63 // pred_check_branch
              %281 = sbr.rel target = $region70
            $region69: #{tpu_custom_call.1} parent=63 // pred_region
              %282 = sst [smem:[#allocation10]] [#allocation13]
              %283 = sst [smem:[#allocation11]] [#allocation12]
            $region70: #{tpu_custom_call.1} parent=63 // pred_fallthru
              _
            %285 = shalt.err (0)
            %s287 = sshll.u32 %s278, 4
            %s288 = int_to_ptr.vmem [resolvable:$true] %s287
            %290 = dma.hbm_to_vmem [thread:$0]  %s277, 16, %s288, %s279
          $region64: #{tpu_custom_call.1} parent=58 // loop_footer
            %s272 = sadd.s32 1, %s268
          $region65: #{tpu_custom_call.1} parent=58 // loop_footer_branch
            %267 = sbr.rel target = $region61
          $region66: #{tpu_custom_call.1} parent=58 // loop_exit
            _
        $region59: #{tpu_custom_call.1} parent=39 // pred_fallthru
          _
        %v291 = vld [vmem:[%s229] sm:$0xff]
        %v292 = vld [vmem:[%s229 + $0x8] sm:$0xff]
        %v293 = vsub.s32 %v291, 64
        %v294 = vsub.s32 %v292, 64
        %v295 = vcvt.s32.f32 %v293
        %v296 = vcvt.s32.f32 %v294
        %v297 = vrcp.pop 16.0
        %v298 = vmul.f32 %v295, %v297
        %v299 = vmul.f32 %v296, %v297
        %v300 = vfloor.f32 %v298
        %v301 = vfloor.f32 %v299
        %vm302 = vcmp.lt.s32.totalorder %v293, 0
        %vm303 = vcmp.lt.s32.totalorder %v294, 0
        %v304 = vsel %vm302, 0, %v293
        %v305 = vsel %vm303, 0, %v294
        %v306 = vcvt.s32.f32 %v304
        %v307 = vcvt.s32.f32 %v305
        %v308 = vld [vmem:[%s2] sm:$0x1]
        %310 = vset.pattern.permute.xlu0 0
        %311 = vperm.xlu0 %310, %v306
        %v312 = vpop.permute.xlu0 %311
        %315 = vset.pattern.permute.xlu0 0
        %316 = vperm.xlu0 %315, %v307
        %v317 = vpop.permute.xlu0 %316
        %v320 = vlaneseq
        %v321 = vshrl.u32 %v320, 7
        %v322 = vsub.s32 0, %v321
        %v323 = vrot.slane %v308, %v322
        %v325 = vmul.f32 %v312, %v323
        %v326 = vmul.f32 %v317, %v323
        %v327 = vand.u32 2147483647, %v325
        %vm328 = vcmp.le.f32.partialorder %v327, 0.7853982
        %vm329 = vcmp.lt.s32.totalorder %v325, 0
        %v330 = vand.u32 %v325, 2139095040
        %v331 = vshrl.u32 %v330, 23
        %v332 = vsub.s32 %v331, 127
        %v333 = vand.u32 2147483647, %v325
        %v334 = vand.u32 %v333, 8388607
        %v335 = vor.u32 %v334, 8388608
        %v336 = vsub.s32 0, %v335
        %v337 = vadd.s32 %v332, 1
        %vm338 = vcmp.gt.s32.totalorder %v337, 0
        %v339 = vsel %vm338, %v337, 0
        %v340 = vshrl.u32 %v339, 5
        %v341 = vand.u32 %v339, 31
        %v342 = vsub.s32 32, %v341
        %v343 = vshrl.u32 683565275, %v342
        %v344 = vshll.u32 683565275, %v341
        %v345 = vshrl.u32 2475754826, %v342
        %v346 = vor.u32 %v344, %v345
        %v347 = vshll.u32 2475754826, %v341
        %v348 = vshrl.u32 2131351028, %v342
        %v349 = vor.u32 %v347, %v348
        %v350 = vshll.u32 2131351028, %v341
        %v351 = vshrl.u32 2102212464, %v342
        %v352 = vor.u32 %v350, %v351
        %v353 = vshll.u32 2102212464, %v341
        %v354 = vshrl.u32 920167782, %v342
        %v355 = vor.u32 %v353, %v354
        %v356 = vshll.u32 920167782, %v341
        %v357 = vshrl.u32 1326507024, %v342
        %v358 = vor.u32 %v356, %v357
        %vm359 = vcmp.lt.s32.totalorder %v340, 1
        %vm360 = vcmp.lt.s32.totalorder %v340, 2
        %vm361 = vcmp.lt.s32.totalorder %v340, 3
        %vm362 = vcmp.lt.s32.totalorder %v340, 4
        %v363 = vsel %vm359, %v343, %v346
        %v364 = vsel %vm362, %v352, 2102212464
        %v365 = vsel %vm361, %v349, %v364
        %v366 = vsel %vm360, %v363, %v365
        %v367 = vsel %vm359, %v346, %v349
        %v368 = vsel %vm362, %v355, 920167782
        %v369 = vsel %vm361, %v352, %v368
        %v370 = vsel %vm360, %v367, %v369
        %v371 = vsel %vm359, %v349, %v352
        %v372 = vsel %vm362, %v358, 1326507024
        %v373 = vsel %vm361, %v355, %v372
        %v374 = vsel %vm360, %v371, %v373
        %v375 = vshll.u32 %v335, 8
        %v376 = vmul.u32.u64.compose %v375, %v374
        %v377 = vextract.low.u32 %v376
        %v378 = vextract.high.u32 %v376
        %v379 = vmul.u32.u64.compose %v375, %v370
        %v380 = vextract.low.u32 %v379
        %v381 = vextract.high.u32 %v379
        %v382 = vmul.u32 %v375, %v366
        %v383 = vadd.s32 %v378, %v380
        %vm384 = vc.u32 %v378, %v380
        %v385 = vadd.s32 %v381, 1
        %v386 = vsel %vm384, %v385, %v381
        %v387 = vadd.s32 %v382, %v386
        %v388 = vadd.s32 %v387, 536870912
        %v389 = vshrl.u32 %v388, 30
        %v390 = vshll.u32 %v389, 30
        %v391 = vsub.s32 %v387, %v390
        %vm392 = vcmp.lt.s32.totalorder %v391, 0
        %v393 = vsub.s32 0, %v391
        %v394 = vsel %vm392, %v393, %v391
        %v395 = vclz %v394
        %v396 = vsub.s32 %v395, 2
        %vm397 = vcmp.gt.s32.totalorder 0, %v396
        %v398 = vsel %vm397, 0, %v396
        %v399 = vsub.s32 32, %v398
        %v400 = vshll.u32 %v391, %v398
        %v401 = vshrl.u32 %v383, %v399
        %v402 = vor.u32 %v400, %v401
        %v403 = vsub.s32 4294967266, %v398
        %v404 = vadd.s32 %v403, 127
        %v405 = vshll.u32 %v404, 23
        %v406 = vor.u32 4788187, %v405
        %v407 = vand.u32 2147483647, %v406
        %v409 = vcvt.s32.f32 %v402
        %v410 = vmul.f32 %v409, %v407
        %v411 = vxor.u32 %v410, 2147483648
        %v412 = vsel %vm329, %v411, %v410
        %v413 = vsub.s32 4, %v389
        %v414 = vsel %vm329, %v413, %v389
        %v415 = vsel %vm328, %v325, %v412
        %v416 = vsel %vm328, 0, %v414
        %v417 = vcosq.f32.pop %v415
        %v418 = vsinq.f32.pop %v415
        %vm419 = vweird.f32 %v325
        %v420 = vadd.s32 %v416, 3
        %v421 = vand.u32 %v420, 3
        %vm422 = vcmp.lt.s32.totalorder %v421, 2
        %vm423 = vcmp.eq.s32.totalorder %v421, 0
        %v424 = vxor.u32 %v418, 2147483648
        %v425 = vsel %vm423, %v417, %v424
        %vm426 = vcmp.eq.s32.totalorder %v421, 2
        %v427 = vxor.u32 %v417, 2147483648
        %v428 = vsel %vm426, %v427, %v418
        %v429 = vsel %vm422, %v425, %v428
        %v430 = vsel %vm419, nan, %v429
        %v431 = vand.u32 2147483647, %v326
        %vm432 = vcmp.le.f32.partialorder %v431, 0.7853982
        %vm433 = vcmp.lt.s32.totalorder %v326, 0
        %v434 = vand.u32 %v326, 2139095040
        %v435 = vshrl.u32 %v434, 23
        %v436 = vsub.s32 %v435, 127
        %v437 = vand.u32 2147483647, %v326
        %v438 = vand.u32 %v437, 8388607
        %v439 = vor.u32 %v438, 8388608
        %v440 = vsub.s32 0, %v439
        %v441 = vadd.s32 %v436, 1
        %vm442 = vcmp.gt.s32.totalorder %v441, 0
        %v443 = vsel %vm442, %v441, 0
        %v444 = vshrl.u32 %v443, 5
        %v445 = vand.u32 %v443, 31
        %v446 = vsub.s32 32, %v445
        %v447 = vshrl.u32 683565275, %v446
        %v448 = vshll.u32 683565275, %v445
        %v449 = vshrl.u32 2475754826, %v446
        %v450 = vor.u32 %v448, %v449
        %v451 = vshll.u32 2475754826, %v445
        %v452 = vshrl.u32 2131351028, %v446
        %v453 = vor.u32 %v451, %v452
        %v454 = vshll.u32 2131351028, %v445
        %v455 = vshrl.u32 2102212464, %v446
        %v456 = vor.u32 %v454, %v455
        %v457 = vshll.u32 2102212464, %v445
        %v458 = vshrl.u32 920167782, %v446
        %v459 = vor.u32 %v457, %v458
        %v460 = vshll.u32 920167782, %v445
        %v461 = vshrl.u32 1326507024, %v446
        %v462 = vor.u32 %v460, %v461
        %vm463 = vcmp.lt.s32.totalorder %v444, 1
        %vm464 = vcmp.lt.s32.totalorder %v444, 2
        %vm465 = vcmp.lt.s32.totalorder %v444, 3
        %vm466 = vcmp.lt.s32.totalorder %v444, 4
        %v467 = vsel %vm463, %v447, %v450
        %v468 = vsel %vm466, %v456, 2102212464
        %v469 = vsel %vm465, %v453, %v468
        %v470 = vsel %vm464, %v467, %v469
        %v471 = vsel %vm463, %v450, %v453
        %v472 = vsel %vm466, %v459, 920167782
        %v473 = vsel %vm465, %v456, %v472
        %v474 = vsel %vm464, %v471, %v473
        %v475 = vsel %vm463, %v453, %v456
        %v476 = vsel %vm466, %v462, 1326507024
        %v477 = vsel %vm465, %v459, %v476
        %v478 = vsel %vm464, %v475, %v477
        %v479 = vshll.u32 %v439, 8
        %v480 = vmul.u32.u64.compose %v479, %v478
        %v481 = vextract.low.u32 %v480
        %v482 = vextract.high.u32 %v480
        %v483 = vmul.u32.u64.compose %v479, %v474
        %v484 = vextract.low.u32 %v483
        %v485 = vextract.high.u32 %v483
        %v486 = vmul.u32 %v479, %v470
        %v487 = vadd.s32 %v482, %v484
        %vm488 = vc.u32 %v482, %v484
        %v489 = vadd.s32 %v485, 1
        %v490 = vsel %vm488, %v489, %v485
        %v491 = vadd.s32 %v486, %v490
        %v492 = vadd.s32 %v491, 536870912
        %v493 = vshrl.u32 %v492, 30
        %v494 = vshll.u32 %v493, 30
        %v495 = vsub.s32 %v491, %v494
        %vm496 = vcmp.lt.s32.totalorder %v495, 0
        %v497 = vsub.s32 0, %v495
        %v498 = vsel %vm496, %v497, %v495
        %v499 = vclz %v498
        %v500 = vsub.s32 %v499, 2
        %vm501 = vcmp.gt.s32.totalorder 0, %v500
        %v502 = vsel %vm501, 0, %v500
        %v503 = vsub.s32 32, %v502
        %v504 = vshll.u32 %v495, %v502
        %v505 = vshrl.u32 %v487, %v503
        %v506 = vor.u32 %v504, %v505
        %v507 = vsub.s32 4294967266, %v502
        %v508 = vadd.s32 %v507, 127
        %v509 = vshll.u32 %v508, 23
        %v510 = vor.u32 4788187, %v509
        %v511 = vand.u32 2147483647, %v510
        %v513 = vcvt.s32.f32 %v506
        %v514 = vmul.f32 %v513, %v511
        %v515 = vxor.u32 %v514, 2147483648
        %v516 = vsel %vm433, %v515, %v514
        %v517 = vsub.s32 4, %v493
        %v518 = vsel %vm433, %v517, %v493
        %v519 = vsel %vm432, %v326, %v516
        %v520 = vsel %vm432, 0, %v518
        %v521 = vcosq.f32.pop %v519
        %v522 = vsinq.f32.pop %v519
        %vm523 = vweird.f32 %v326
        %v524 = vadd.s32 %v520, 3
        %v525 = vand.u32 %v524, 3
        %vm526 = vcmp.lt.s32.totalorder %v525, 2
        %vm527 = vcmp.eq.s32.totalorder %v525, 0
        %v528 = vxor.u32 %v522, 2147483648
        %v529 = vsel %vm527, %v521, %v528
        %vm530 = vcmp.eq.s32.totalorder %v525, 2
        %v531 = vxor.u32 %v521, 2147483648
        %v532 = vsel %vm530, %v531, %v522
        %v533 = vsel %vm526, %v529, %v532
        %v534 = vsel %vm523, nan, %v533
        %v535 = vpack.c.bf16 %v534, %v430
        %v536 = vand.u32 2147483647, %v325
        %vm537 = vcmp.le.f32.partialorder %v536, 0.7853982
        %vm538 = vcmp.lt.s32.totalorder %v325, 0
        %v539 = vand.u32 %v325, 2139095040
        %v540 = vshrl.u32 %v539, 23
        %v541 = vsub.s32 %v540, 127
        %v542 = vand.u32 2147483647, %v325
        %v543 = vand.u32 %v542, 8388607
        %v544 = vor.u32 %v543, 8388608
        %v545 = vsub.s32 0, %v544
        %v546 = vadd.s32 %v541, 1
        %vm547 = vcmp.gt.s32.totalorder %v546, 0
        %v548 = vsel %vm547, %v546, 0
        %v549 = vshrl.u32 %v548, 5
        %v550 = vand.u32 %v548, 31
        %v551 = vsub.s32 32, %v550
        %v552 = vshrl.u32 683565275, %v551
        %v553 = vshll.u32 683565275, %v550
        %v554 = vshrl.u32 2475754826, %v551
        %v555 = vor.u32 %v553, %v554
        %v556 = vshll.u32 2475754826, %v550
        %v557 = vshrl.u32 2131351028, %v551
        %v558 = vor.u32 %v556, %v557
        %v559 = vshll.u32 2131351028, %v550
        %v560 = vshrl.u32 2102212464, %v551
        %v561 = vor.u32 %v559, %v560
        %v562 = vshll.u32 2102212464, %v550
        %v563 = vshrl.u32 920167782, %v551
        %v564 = vor.u32 %v562, %v563
        %v565 = vshll.u32 920167782, %v550
        %v566 = vshrl.u32 1326507024, %v551
        %v567 = vor.u32 %v565, %v566
        %vm568 = vcmp.lt.s32.totalorder %v549, 1
        %vm569 = vcmp.lt.s32.totalorder %v549, 2
        %vm570 = vcmp.lt.s32.totalorder %v549, 3
        %vm571 = vcmp.lt.s32.totalorder %v549, 4
        %v572 = vsel %vm568, %v552, %v555
        %v573 = vsel %vm571, %v561, 2102212464
        %v574 = vsel %vm570, %v558, %v573
        %v575 = vsel %vm569, %v572, %v574
        %v576 = vsel %vm568, %v555, %v558
        %v577 = vsel %vm571, %v564, 920167782
        %v578 = vsel %vm570, %v561, %v577
        %v579 = vsel %vm569, %v576, %v578
        %v580 = vsel %vm568, %v558, %v561
        %v581 = vsel %vm571, %v567, 1326507024
        %v582 = vsel %vm570, %v564, %v581
        %v583 = vsel %vm569, %v580, %v582
        %v584 = vshll.u32 %v544, 8
        %v585 = vmul.u32.u64.compose %v584, %v583
        %v586 = vextract.low.u32 %v585
        %v587 = vextract.high.u32 %v585
        %v588 = vmul.u32.u64.compose %v584, %v579
        %v589 = vextract.low.u32 %v588
        %v590 = vextract.high.u32 %v588
        %v591 = vmul.u32 %v584, %v575
        %v592 = vadd.s32 %v587, %v589
        %vm593 = vc.u32 %v587, %v589
        %v594 = vadd.s32 %v590, 1
        %v595 = vsel %vm593, %v594, %v590
        %v596 = vadd.s32 %v591, %v595
        %v597 = vadd.s32 %v596, 536870912
        %v598 = vshrl.u32 %v597, 30
        %v599 = vshll.u32 %v598, 30
        %v600 = vsub.s32 %v596, %v599
        %vm601 = vcmp.lt.s32.totalorder %v600, 0
        %v602 = vsub.s32 0, %v600
        %v603 = vsel %vm601, %v602, %v600
        %v604 = vclz %v603
        %v605 = vsub.s32 %v604, 2
        %vm606 = vcmp.gt.s32.totalorder 0, %v605
        %v607 = vsel %vm606, 0, %v605
        %v608 = vsub.s32 32, %v607
        %v609 = vshll.u32 %v600, %v607
        %v610 = vshrl.u32 %v592, %v608
        %v611 = vor.u32 %v609, %v610
        %v612 = vsub.s32 4294967266, %v607
        %v613 = vadd.s32 %v612, 127
        %v614 = vshll.u32 %v613, 23
        %v615 = vor.u32 4788187, %v614
        %v616 = vand.u32 2147483647, %v615
        %v618 = vcvt.s32.f32 %v611
        %v619 = vmul.f32 %v618, %v616
        %v620 = vxor.u32 %v619, 2147483648
        %v621 = vsel %vm538, %v620, %v619
        %v622 = vsub.s32 4, %v598
        %v623 = vsel %vm538, %v622, %v598
        %v624 = vsel %vm537, %v325, %v621
        %v625 = vsel %vm537, 0, %v623
        %v626 = vcosq.f32.pop %v624
        %v627 = vsinq.f32.pop %v624
        %vm628 = vweird.f32 %v325
        %v629 = vand.u32 %v625, 3
        %vm630 = vcmp.lt.s32.totalorder %v629, 2
        %vm631 = vcmp.eq.s32.totalorder %v629, 0
        %v632 = vxor.u32 %v627, 2147483648
        %v633 = vsel %vm631, %v626, %v632
        %vm634 = vcmp.eq.s32.totalorder %v629, 2
        %v635 = vxor.u32 %v626, 2147483648
        %v636 = vsel %vm634, %v635, %v627
        %v637 = vsel %vm630, %v633, %v636
        %v638 = vsel %vm628, nan, %v637
        %v639 = vand.u32 2147483647, %v326
        %vm640 = vcmp.le.f32.partialorder %v639, 0.7853982
        %vm641 = vcmp.lt.s32.totalorder %v326, 0
        %v642 = vand.u32 %v326, 2139095040
        %v643 = vshrl.u32 %v642, 23
        %v644 = vsub.s32 %v643, 127
        %v645 = vand.u32 2147483647, %v326
        %v646 = vand.u32 %v645, 8388607
        %v647 = vor.u32 %v646, 8388608
        %v648 = vsub.s32 0, %v647
        %v649 = vadd.s32 %v644, 1
        %vm650 = vcmp.gt.s32.totalorder %v649, 0
        %v651 = vsel %vm650, %v649, 0
        %v652 = vshrl.u32 %v651, 5
        %v653 = vand.u32 %v651, 31
        %v654 = vsub.s32 32, %v653
        %v655 = vshrl.u32 683565275, %v654
        %v656 = vshll.u32 683565275, %v653
        %v657 = vshrl.u32 2475754826, %v654
        %v658 = vor.u32 %v656, %v657
        %v659 = vshll.u32 2475754826, %v653
        %v660 = vshrl.u32 2131351028, %v654
        %v661 = vor.u32 %v659, %v660
        %v662 = vshll.u32 2131351028, %v653
        %v663 = vshrl.u32 2102212464, %v654
        %v664 = vor.u32 %v662, %v663
        %v665 = vshll.u32 2102212464, %v653
        %v666 = vshrl.u32 920167782, %v654
        %v667 = vor.u32 %v665, %v666
        %v668 = vshll.u32 920167782, %v653
        %v669 = vshrl.u32 1326507024, %v654
        %v670 = vor.u32 %v668, %v669
        %vm671 = vcmp.lt.s32.totalorder %v652, 1
        %vm672 = vcmp.lt.s32.totalorder %v652, 2
        %vm673 = vcmp.lt.s32.totalorder %v652, 3
        %vm674 = vcmp.lt.s32.totalorder %v652, 4
        %v675 = vsel %vm671, %v655, %v658
        %v676 = vsel %vm674, %v664, 2102212464
        %v677 = vsel %vm673, %v661, %v676
        %v678 = vsel %vm672, %v675, %v677
        %v679 = vsel %vm671, %v658, %v661
        %v680 = vsel %vm674, %v667, 920167782
        %v681 = vsel %vm673, %v664, %v680
        %v682 = vsel %vm672, %v679, %v681
        %v683 = vsel %vm671, %v661, %v664
        %v684 = vsel %vm674, %v670, 1326507024
        %v685 = vsel %vm673, %v667, %v684
        %v686 = vsel %vm672, %v683, %v685
        %v687 = vshll.u32 %v647, 8
        %v688 = vmul.u32.u64.compose %v687, %v686
        %v689 = vextract.low.u32 %v688
        %v690 = vextract.high.u32 %v688
        %v691 = vmul.u32.u64.compose %v687, %v682
        %v692 = vextract.low.u32 %v691
        %v693 = vextract.high.u32 %v691
        %v694 = vmul.u32 %v687, %v678
        %v695 = vadd.s32 %v690, %v692
        %vm696 = vc.u32 %v690, %v692
        %v697 = vadd.s32 %v693, 1
        %v698 = vsel %vm696, %v697, %v693
        %v699 = vadd.s32 %v694, %v698
        %v700 = vadd.s32 %v699, 536870912
        %v701 = vshrl.u32 %v700, 30
        %v702 = vshll.u32 %v701, 30
        %v703 = vsub.s32 %v699, %v702
        %vm704 = vcmp.lt.s32.totalorder %v703, 0
        %v705 = vsub.s32 0, %v703
        %v706 = vsel %vm704, %v705, %v703
        %v707 = vclz %v706
        %v708 = vsub.s32 %v707, 2
        %vm709 = vcmp.gt.s32.totalorder 0, %v708
        %v710 = vsel %vm709, 0, %v708
        %v711 = vsub.s32 32, %v710
        %v712 = vshll.u32 %v703, %v710
        %v713 = vshrl.u32 %v695, %v711
        %v714 = vor.u32 %v712, %v713
        %v715 = vsub.s32 4294967266, %v710
        %v716 = vadd.s32 %v715, 127
        %v717 = vshll.u32 %v716, 23
        %v718 = vor.u32 4788187, %v717
        %v719 = vand.u32 2147483647, %v718
        %v721 = vcvt.s32.f32 %v714
        %v722 = vmul.f32 %v721, %v719
        %v723 = vxor.u32 %v722, 2147483648
        %v724 = vsel %vm641, %v723, %v722
        %v725 = vsub.s32 4, %v701
        %v726 = vsel %vm641, %v725, %v701
        %v727 = vsel %vm640, %v326, %v724
        %v728 = vsel %vm640, 0, %v726
        %v729 = vcosq.f32.pop %v727
        %v730 = vsinq.f32.pop %v727
        %vm731 = vweird.f32 %v326
        %v732 = vand.u32 %v728, 3
        %vm733 = vcmp.lt.s32.totalorder %v732, 2
        %vm734 = vcmp.eq.s32.totalorder %v732, 0
        %v735 = vxor.u32 %v730, 2147483648
        %v736 = vsel %vm734, %v729, %v735
        %vm737 = vcmp.eq.s32.totalorder %v732, 2
        %v738 = vxor.u32 %v729, 2147483648
        %v739 = vsel %vm737, %v738, %v730
        %v740 = vsel %vm733, %v736, %v739
        %v741 = vsel %vm731, nan, %v740
        %v742 = vpack.c.bf16 %v741, %v638
        %v743 = vld [vmem:[%s3] sm:$0xff]
        %v744 = vld [vmem:[%s3 + $0x8] sm:$0xff]
        %v745 = vld [vmem:[%s4] sm:$0xff]
        %v746 = vld [vmem:[%s4 + $0x8] sm:$0xff]
        %v749 = vunpack.c.l.b16 %v745
        %v750 = vunpack.c.h.b16 %v745
        %v751 = vunpack.c.l.b16 %v746
        %v752 = vunpack.c.h.b16 %v746
        %v753 = vpack.c.b16 %v749, %v749
        %v754 = vpack.c.b16 %v750, %v750
        %v755 = vpack.c.b16 %v751, %v751
        %v756 = vpack.c.b16 %v752, %v752
        %vm757 = vcmask 64512
        %v759 = vsel %vm757, %v742, 0
        %vm761 = vcmask 1043456
        %v763 = vsel %vm761, %v753, 0
        %v766 = vsel %vm761, %v754, 0
        %v769 = vsel %vm761, %v755, 0
        %v772 = vsel %vm761, %v756, 0
        %774 = vmatprep.subr.bf16.mxu0 %v766
        %775 = vmatpush1.bf16.msra.mxu0 %v763
        %776 = vmatprep.subr.bf16.mxu0 0
        %777 = vmatpush1.bf16.msra.mxu0 0
        %778 = vmatprep.subr.bf16.mxu0 0
        %779 = vmatpush1.bf16.msra.mxu0 0
        %780 = vmatprep.subr.bf16.mxu0 0
        %781 = vmatpush1.bf16.msra.mxu0 0
        %782 = vmatprep.subr.bf16.mxu0 0
        %783 = vmatpush1.bf16.msra.mxu0 0
        %784 = vmatprep.subr.bf16.mxu0 0
        %785 = vmatpush1.bf16.msra.mxu0 0
        %786 = vmatprep.subr.bf16.mxu0 0
        %787 = vmatpush1.bf16.msra.mxu0 0
        %788 = vmatprep.subr.bf16.mxu0 0
        %789 = vmatpush1.bf16.msra.mxu0 0
        %790 = vmatprep.subr.bf16.mxu0 0
        %791 = vmatpush1.bf16.msra.mxu0 0
        %792 = vmatprep.subr.bf16.mxu0 0
        %793 = vmatpush1.bf16.msra.mxu0 0
        %794 = vmatprep.subr.bf16.mxu0 0
        %795 = vmatpush1.bf16.msra.mxu0 0
        %796 = vmatprep.subr.bf16.mxu0 0
        %797 = vmatpush1.bf16.msra.mxu0 0
        %798 = vmatprep.subr.bf16.mxu0 0
        %799 = vmatpush1.bf16.msra.mxu0 0
        %800 = vmatprep.subr.bf16.mxu0 0
        %801 = vmatpush1.bf16.msra.mxu0 0
        %802 = vmatprep.subr.bf16.mxu0 0
        %803 = vmatpush1.bf16.msra.mxu0 0
        %804 = vmatprep.subr.bf16.mxu0 0
        %805 = vmatpush1.bf16.msra.mxu0 0
        %806 = vmatprep.mubr.bf16.mxu0 0
        %807 = vmatmul.mubr.bf16.gmra.mrb[0].mxu0 %v759
        %v808 = vpop.f32.mrb[0].mxu0
        %v809 = vadd.f32 0.0, %v808
        %v810 = vpop.f32.mrb[0].mxu0
        %v811 = vadd.f32 0.0, %v810
        %v812 = vpop.f32.mrb[0].mxu0
        %v813 = vadd.f32 0.0, %v812
        %v814 = vpop.f32.mrb[0].mxu0
        %v815 = vadd.f32 0.0, %v814
        %816 = vdwg.mxu0
        %817 = vmatprep.subr.bf16.mxu0 %v772
        %818 = vmatpush1.bf16.msra.mxu0 %v769
        %819 = vmatprep.subr.bf16.mxu0 0
        %820 = vmatpush1.bf16.msra.mxu0 0
        %821 = vmatprep.subr.bf16.mxu0 0
        %822 = vmatpush1.bf16.msra.mxu0 0
        %823 = vmatprep.subr.bf16.mxu0 0
        %824 = vmatpush1.bf16.msra.mxu0 0
        %825 = vmatprep.subr.bf16.mxu0 0
        %826 = vmatpush1.bf16.msra.mxu0 0
        %827 = vmatprep.subr.bf16.mxu0 0
        %828 = vmatpush1.bf16.msra.mxu0 0
        %829 = vmatprep.subr.bf16.mxu0 0
        %830 = vmatpush1.bf16.msra.mxu0 0
        %831 = vmatprep.subr.bf16.mxu0 0
        %832 = vmatpush1.bf16.msra.mxu0 0
        %833 = vmatprep.subr.bf16.mxu0 0
        %834 = vmatpush1.bf16.msra.mxu0 0
        %835 = vmatprep.subr.bf16.mxu0 0
        %836 = vmatpush1.bf16.msra.mxu0 0
        %837 = vmatprep.subr.bf16.mxu0 0
        %838 = vmatpush1.bf16.msra.mxu0 0
        %839 = vmatprep.subr.bf16.mxu0 0
        %840 = vmatpush1.bf16.msra.mxu0 0
        %841 = vmatprep.subr.bf16.mxu0 0
        %842 = vmatpush1.bf16.msra.mxu0 0
        %843 = vmatprep.subr.bf16.mxu0 0
        %844 = vmatpush1.bf16.msra.mxu0 0
        %845 = vmatprep.subr.bf16.mxu0 0
        %846 = vmatpush1.bf16.msra.mxu0 0
        %847 = vmatprep.subr.bf16.mxu0 0
        %848 = vmatpush1.bf16.msra.mxu0 0
        %849 = vmatprep.mubr.bf16.mxu0 0
        %850 = vmatmul.mubr.bf16.gmra.mrb[0].mxu0 %v759
        %v851 = vpop.f32.mrb[0].mxu0
        %v852 = vadd.f32 0.0, %v851
        %v853 = vpop.f32.mrb[0].mxu0
        %v854 = vadd.f32 0.0, %v853
        %v855 = vpop.f32.mrb[0].mxu0
        %v856 = vadd.f32 0.0, %v855
        %v857 = vpop.f32.mrb[0].mxu0
        %v858 = vadd.f32 0.0, %v857
        %859 = vdwg.mxu0
        %v862 = vunpack.c.l.b16 %v743
        %v863 = vunpack.c.h.b16 %v743
        %v864 = vunpack.c.l.b16 %v744
        %v865 = vunpack.c.h.b16 %v744
        %v866 = vpack.c.b16 %v862, %v862
        %v867 = vpack.c.b16 %v863, %v863
        %v868 = vpack.c.b16 %v864, %v864
        %v869 = vpack.c.b16 %v865, %v865
        %v871 = vsel %vm757, %v535, 0
        %v874 = vsel %vm761, %v866, 0
        %v877 = vsel %vm761, %v867, 0
        %v880 = vsel %vm761, %v868, 0
        %v883 = vsel %vm761, %v869, 0
        %885 = vmatprep.subr.bf16.mxu0 %v877
        %886 = vmatpush1.bf16.msra.mxu0 %v874
        %887 = vmatprep.subr.bf16.mxu0 0
        %888 = vmatpush1.bf16.msra.mxu0 0
        %889 = vmatprep.subr.bf16.mxu0 0
        %890 = vmatpush1.bf16.msra.mxu0 0
        %891 = vmatprep.subr.bf16.mxu0 0
        %892 = vmatpush1.bf16.msra.mxu0 0
        %893 = vmatprep.subr.bf16.mxu0 0
        %894 = vmatpush1.bf16.msra.mxu0 0
        %895 = vmatprep.subr.bf16.mxu0 0
        %896 = vmatpush1.bf16.msra.mxu0 0
        %897 = vmatprep.subr.bf16.mxu0 0
        %898 = vmatpush1.bf16.msra.mxu0 0
        %899 = vmatprep.subr.bf16.mxu0 0
        %900 = vmatpush1.bf16.msra.mxu0 0
        %901 = vmatprep.subr.bf16.mxu0 0
        %902 = vmatpush1.bf16.msra.mxu0 0
        %903 = vmatprep.subr.bf16.mxu0 0
        %904 = vmatpush1.bf16.msra.mxu0 0
        %905 = vmatprep.subr.bf16.mxu0 0
        %906 = vmatpush1.bf16.msra.mxu0 0
        %907 = vmatprep.subr.bf16.mxu0 0
        %908 = vmatpush1.bf16.msra.mxu0 0
        %909 = vmatprep.subr.bf16.mxu0 0
        %910 = vmatpush1.bf16.msra.mxu0 0
        %911 = vmatprep.subr.bf16.mxu0 0
        %912 = vmatpush1.bf16.msra.mxu0 0
        %913 = vmatprep.subr.bf16.mxu0 0
        %914 = vmatpush1.bf16.msra.mxu0 0
        %915 = vmatprep.subr.bf16.mxu0 0
        %916 = vmatpush1.bf16.msra.mxu0 0
        %917 = vmatprep.mubr.bf16.mxu0 0
        %918 = vmatmul.mubr.bf16.gmra.mrb[0].mxu0 %v871
        %v919 = vpop.f32.mrb[0].mxu0
        %v920 = vadd.f32 %v809, %v919
        %v921 = vpop.f32.mrb[0].mxu0
        %v922 = vadd.f32 %v811, %v921
        %v923 = vpop.f32.mrb[0].mxu0
        %v924 = vadd.f32 %v813, %v923
        %v925 = vpop.f32.mrb[0].mxu0
        %v926 = vadd.f32 %v815, %v925
        %927 = vdwg.mxu0
        %928 = vmatprep.subr.bf16.mxu0 %v883
        %929 = vmatpush1.bf16.msra.mxu0 %v880
        %930 = vmatprep.subr.bf16.mxu0 0
        %931 = vmatpush1.bf16.msra.mxu0 0
        %932 = vmatprep.subr.bf16.mxu0 0
        %933 = vmatpush1.bf16.msra.mxu0 0
        %934 = vmatprep.subr.bf16.mxu0 0
        %935 = vmatpush1.bf16.msra.mxu0 0
        %936 = vmatprep.subr.bf16.mxu0 0
        %937 = vmatpush1.bf16.msra.mxu0 0
        %938 = vmatprep.subr.bf16.mxu0 0
        %939 = vmatpush1.bf16.msra.mxu0 0
        %940 = vmatprep.subr.bf16.mxu0 0
        %941 = vmatpush1.bf16.msra.mxu0 0
        %942 = vmatprep.subr.bf16.mxu0 0
        %943 = vmatpush1.bf16.msra.mxu0 0
        %944 = vmatprep.subr.bf16.mxu0 0
        %945 = vmatpush1.bf16.msra.mxu0 0
        %946 = vmatprep.subr.bf16.mxu0 0
        %947 = vmatpush1.bf16.msra.mxu0 0
        %948 = vmatprep.subr.bf16.mxu0 0
        %949 = vmatpush1.bf16.msra.mxu0 0
        %950 = vmatprep.subr.bf16.mxu0 0
        %951 = vmatpush1.bf16.msra.mxu0 0
        %952 = vmatprep.subr.bf16.mxu0 0
        %953 = vmatpush1.bf16.msra.mxu0 0
        %954 = vmatprep.subr.bf16.mxu0 0
        %955 = vmatpush1.bf16.msra.mxu0 0
        %956 = vmatprep.subr.bf16.mxu0 0
        %957 = vmatpush1.bf16.msra.mxu0 0
        %958 = vmatprep.subr.bf16.mxu0 0
        %959 = vmatpush1.bf16.msra.mxu0 0
        %960 = vmatprep.mubr.bf16.mxu0 0
        %961 = vmatmul.mubr.bf16.gmra.mrb[0].mxu0 %v871
        %v962 = vpop.f32.mrb[0].mxu0
        %v963 = vadd.f32 %v852, %v962
        %v964 = vpop.f32.mrb[0].mxu0
        %v965 = vadd.f32 %v854, %v964
        %v966 = vpop.f32.mrb[0].mxu0
        %v967 = vadd.f32 %v856, %v966
        %v968 = vpop.f32.mrb[0].mxu0
        %v969 = vadd.f32 %v858, %v968
        %970 = vdwg.mxu0
        %v971 = vld [vmem:[%s5] sm:$0xf]
        %v973 = vlaneseq
        %v974 = vshrl.u32 %v973, 7
        %v975 = vsub.s32 0, %v974
        %v976 = vrot.slane %v971, %v975
        %v977 = vlaneseq
        %v978 = vshrl.u32 %v977, 7
        %v979 = vsub.s32 1, %v978
        %v980 = vrot.slane %v971, %v979
        %v981 = vlaneseq
        %v982 = vshrl.u32 %v981, 7
        %v983 = vsub.s32 2, %v982
        %v984 = vrot.slane %v971, %v983
        %v985 = vlaneseq
        %v986 = vshrl.u32 %v985, 7
        %v987 = vsub.s32 3, %v986
        %v988 = vrot.slane %v971, %v987
        %v993 = vadd.f32 %v920, %v976
        %v994 = vadd.f32 %v922, %v980
        %v995 = vadd.f32 %v963, %v984
        %v996 = vadd.f32 %v965, %v988
        %v997 = vadd.f32 %v924, %v976
        %v998 = vadd.f32 %v926, %v980
        %v999 = vadd.f32 %v967, %v984
        %v1000 = vadd.f32 %v969, %v988
        %s1001 = smul.u32 %s233, 16
        loop: start=0, step=1, limit=16
        $region71: #{tpu_custom_call.1} parent=39 // loop_pre_header
          _
        $region72: #{tpu_custom_call.1} parent=39 // loop_header
          %s1003 = sphi 0, %s1007
          %p1004 = scmp.ge.s32.totalorder %s1003, 16
        $region73: #{tpu_custom_call.1} parent=39 // loop_header_branch
          %1006 = sbr.rel (%p1004) target = $region77
        $region74: #{tpu_custom_call.1} parent=39 // loop_body
          %s1008 = scalar_lea.sflag [#allocation3], %s233
          %s1009 = smul.u32 1, 1
          %s1010 = sshll.u32 %s1009, 4
          %1011 = dma.done %s1008, %s1010
        $region75: #{tpu_custom_call.1} parent=39 // loop_footer
          %s1007 = sadd.s32 1, %s1003
        $region76: #{tpu_custom_call.1} parent=39 // loop_footer_branch
          %1002 = sbr.rel target = $region72
        $region77: #{tpu_custom_call.1} parent=39 // loop_exit
          _
        %s1012 = scalar_lea.vmem [#allocation2], %s1001
        %v1013 = vld [vmem:[%s1012] sm:$0xff]
        %v1014 = vld [vmem:[%s1012 + $0x8] sm:$0xff]
        %vm1015 = vcmp.eq.f32.partialorder %v300, 0.0
        %vm1016 = vcmp.eq.f32.partialorder %v301, 0.0
        %v1017 = vsel %vm1015, 1, 0
        %v1018 = vsel %vm1016, 1, 0
        %1019 = vset.pattern.permute.xlu0 0
        %1020 = vperm.xlu0 %1019, %v1017
        %v1021 = vpop.permute.xlu0 %1020
        %1022 = vset.pattern.permute.xlu0 0
        %1023 = vperm.xlu0 %1022, %v1018
        %v1024 = vpop.permute.xlu0 %1023
        %vm1025 = vcmp.eq.s32.totalorder %v1021, 1
        %vm1026 = vcmp.eq.s32.totalorder %v1024, 1
        %v1027 = vsel %vm1025, %v993, %v1013
        %v1028 = vsel %vm1026, %v997, %v1014
        %vm1029 = vcmp.eq.f32.partialorder %v300, 1.0
        %vm1030 = vcmp.eq.f32.partialorder %v301, 1.0
        %v1031 = vsel %vm1029, 1, 0
        %v1032 = vsel %vm1030, 1, 0
        %1033 = vset.pattern.permute.xlu0 0
        %1034 = vperm.xlu0 %1033, %v1031
        %v1035 = vpop.permute.xlu0 %1034
        %1036 = vset.pattern.permute.xlu0 0
        %1037 = vperm.xlu0 %1036, %v1032
        %v1038 = vpop.permute.xlu0 %1037
        %vm1039 = vcmp.eq.s32.totalorder %v1035, 1
        %vm1040 = vcmp.eq.s32.totalorder %v1038, 1
        %v1041 = vsel %vm1039, %v994, %v1027
        %v1042 = vsel %vm1040, %v998, %v1028
        %vm1043 = vcmp.eq.f32.partialorder %v300, 2.0
        %vm1044 = vcmp.eq.f32.partialorder %v301, 2.0
        %v1045 = vsel %vm1043, 1, 0
        %v1046 = vsel %vm1044, 1, 0
        %1047 = vset.pattern.permute.xlu0 0
        %1048 = vperm.xlu0 %1047, %v1045
        %v1049 = vpop.permute.xlu0 %1048
        %1050 = vset.pattern.permute.xlu0 0
        %1051 = vperm.xlu0 %1050, %v1046
        %v1052 = vpop.permute.xlu0 %1051
        %vm1053 = vcmp.eq.s32.totalorder %v1049, 1
        %vm1054 = vcmp.eq.s32.totalorder %v1052, 1
        %v1055 = vsel %vm1053, %v995, %v1041
        %v1056 = vsel %vm1054, %v999, %v1042
        %vm1057 = vcmp.eq.f32.partialorder %v300, 3.0
        %vm1058 = vcmp.eq.f32.partialorder %v301, 3.0
        %v1059 = vsel %vm1057, 1, 0
        %v1060 = vsel %vm1058, 1, 0
        %1061 = vset.pattern.permute.xlu0 0
        %1062 = vperm.xlu0 %1061, %v1059
        %v1063 = vpop.permute.xlu0 %1062
        %1064 = vset.pattern.permute.xlu0 0
        %1065 = vperm.xlu0 %1064, %v1060
        %v1066 = vpop.permute.xlu0 %1065
        %vm1067 = vcmp.eq.s32.totalorder %v1063, 1
        %vm1068 = vcmp.eq.s32.totalorder %v1066, 1
        %v1069 = vsel %vm1067, %v996, %v1055
        %v1070 = vsel %vm1068, %v1000, %v1056
        %1071 = vst [vmem:[%s224] sm:$0xff] %v1069
        %1072 = vst [vmem:[%s224 + $0x8] sm:$0xff] %v1070
        %s1073 = sand.u32 %s143, 1
        %s1074 = scalar_lea.sflag [#allocation7], %s1073
        %s1075 = sand.u32 %s143, 1
        %s1076 = smul.addr %s1075, 16
        %s1077 = scalar_lea.vmem [#allocation6], %s1076
        // Predicated region
        $region78: #{tpu_custom_call.1} parent=39 // pred_check
          %p1078 = pneg %p153
        $region79: #{tpu_custom_call.1} parent=39 // pred_check_branch
          %1080 = sbr.rel (%p1078) target = $region81
        $region80: #{tpu_custom_call.1} parent=39 // pred_region
          %s1081 = smul.u32 2, %s25
          %s1083 = ssub.s32 256, 256
          %1084 = vsyncadd %s1074, %s1083
          %s1085 = smul.addr %s1081, 128
          %s1086 = scalar_lea.hbm %s7, %s1085
          %s1087 = sshll.u32 %s1077, 4
          %s1088 = int_to_ptr.vmem [resolvable:$true] %s1087
          %1093 = dma.vmem_to_hbm [thread:$0]  %s1088, 256, %s1086, %s1074, 128, 128, 8
        $region81: #{tpu_custom_call.1} parent=39 // pred_fallthru
          _
      $region40: #{tpu_custom_call.1} parent=5 // pred_fallthru
        _
      %p1094 = scmp.le.s32.totalorder 2, %s20
      // Predicated region
      $region82: #{tpu_custom_call.1} parent=5 // pred_check
        %p1095 = pneg %p1094
      $region83: #{tpu_custom_call.1} parent=5 // pred_check_branch
        %1097 = sbr.rel (%p1095) target = $region85
      $region84: #{tpu_custom_call.1} parent=5 // pred_region
        %s1098 = ssub.s32 %s20, 2
        // Predicated region
        $region86: #{tpu_custom_call.1} parent=84 // pred_check
          %p1099 = pneg %p159
        $region87: #{tpu_custom_call.1} parent=84 // pred_check_branch
          %1101 = sbr.rel (%p1099) target = $region89
        $region88: #{tpu_custom_call.1} parent=84 // pred_region
          %s1102 = sand.u32 %s144, 1
          %s1103 = scalar_lea.sflag [#allocation7], %s1102
          %s1104 = sand.u32 %s144, 1
          %s1105 = smul.addr %s1104, 16
          %s1106 = scalar_lea.vmem [#allocation6], %s1105
          %1107 = dma.done %s1103, 256
        $region89: #{tpu_custom_call.1} parent=84 // pred_fallthru
          _
      $region85: #{tpu_custom_call.1} parent=5 // pred_fallthru
        _
    $region6: #{tpu_custom_call.1} parent=1 // loop_footer
      %s24 = sadd.s32 1, %s20
    $region7: #{tpu_custom_call.1} parent=1 // loop_footer_branch
      %19 = sbr.rel target = $region3
    $region8: #{tpu_custom_call.1} parent=1 // loop_exit
      _
    %1108 = vsyncpa [#allocation7], 1
    %s1109 = scalar_lea.sflag [#allocation7], 1
    %1110 = vsyncpa %s1109, 1
  %1111 = vsyncmov [#allocation3]
  %s1112 = vpop.sfrf %1111
  %p1113 = scmp.eq.s32.totalorder %s1112, 0
  %p1114 = pneg %p1113
  %1116 = shalt.err (%p1114)
  %s1117 = scalar_lea.sflag [#allocation3], 1
  %1118 = vsyncmov %s1117
  %s1119 = vpop.sfrf %1118
  %p1120 = scmp.eq.s32.totalorder %s1119, 0
  %p1121 = pneg %p1120
  %1123 = shalt.err (%p1121)

</llo_original>
